<compile_context>
chip_gen: v5e
topology: v5e:2x2
jax: 0.10.0
libtpu: 0.0.40
codegen_flags: <defaults>
</compile_context>

<pallas_src>
import jax
import jax.numpy as jnp
from jax import lax
from jax.experimental import pallas as pl
from jax.experimental.pallas import tpu as pltpu


def clip_embedding(tokens, token_table, pos_embedding, *,
                   max_rows_per_block=256, n_outstanding_dmas=8):
    """tokens: (B, T) integer ids; token_table: (V, D); pos_embedding: (T, D)."""
    B, T = tokens.shape
    V, D = token_table.shape
    assert pos_embedding.shape == (T, D)

    # Rows (tokens) handled per grid step.  For CLIP-sized T (<= 256) the whole
    # sequence fits in one block, so block shapes equal the full array dims and
    # no padding is required.  Longer sequences are tiled in blocks of 128 rows.
    if T <= max_rows_per_block:
        R, Tp = T, T
    else:
        R = 128
        Tp = pl.cdiv(T, R) * R

    # Ids are addressing scalars: int32, clamped to guard against unchecked
    # out-of-range table reads on TPU; flattened for SMEM scalar prefetch.
    ids = jnp.clip(tokens.astype(jnp.int32), 0, V - 1)
    pos = pos_embedding.astype(token_table.dtype)
    if Tp != T:
        ids = jnp.pad(ids, ((0, 0), (0, Tp - T)))
        pos = jnp.pad(pos, ((0, Tp - T), (0, 0)))
    ids_flat = ids.reshape(B * Tp)

    n_tb = Tp // R
    grid = (B, n_tb)
    nsem = min(n_outstanding_dmas, R)       # outstanding row DMAs per block
    unroll = R <= 16
    itemsize = jnp.dtype(token_table.dtype).itemsize

    def kernel(ids_ref, table_hbm, pos_ref, out_ref, rows_ref, sem_ref):
        b = pl.program_id(0)
        j = pl.program_id(1)
        base = b * Tp + j * R

        def issue(r):
            tok = ids_ref[base + r]
            pltpu.make_async_copy(
                table_hbm.at[pl.ds(tok, 1), :],
                rows_ref.at[pl.ds(r, 1), :],
                sem_ref.at[r % nsem],
            ).start()

        def wait_for(r):
            tok = ids_ref[base + r]
            pltpu.make_async_copy(
                table_hbm.at[pl.ds(tok, 1), :],
                rows_ref.at[pl.ds(r, 1), :],
                sem_ref.at[r % nsem],
            ).wait()

        def _prologue(r, carry):
            issue(r)
            return carry

        def _steady(r, carry):
            wait_for(r - nsem)
            issue(r)
            return carry

        def _epilogue(r, carry):
            wait_for(r)
            return carry

        # Fill the DMA window, keep it full, then drain it.
        lax.fori_loop(0, nsem, _prologue, 0, unroll=unroll)
        if nsem < R:
            lax.fori_loop(nsem, R, _steady, 0, unroll=unroll)
        lax.fori_loop(R - nsem, R, _epilogue, 0, unroll=unroll)

        # One wide (R, D) add + lane-dense store.
        if n_tb == 1:
            pos_block = pos_ref[...]
        else:
            start = pl.multiple_of(j * R, R)   # R == 128 here
            pos_block = pos_ref[pl.ds(start, R), :]
        out_ref[...] = rows_ref[...] + pos_block

    table_spec = pl.BlockSpec(memory_space=pl.ANY)              # raw HBM ref
    pos_spec = pl.BlockSpec((Tp, D), lambda b, j, ids: (0, 0))  # VMEM-resident once
    out_spec = pl.BlockSpec((None, R, D), lambda b, j, ids: (b, j, 0))

    cost = pl.CostEstimate(
        flops=B * Tp * D,
        transcendentals=0,
        bytes_accessed=(2 * B * Tp * D + Tp * D) * itemsize + B * Tp * 4,
    )

    out = pl.pallas_call(
        kernel,
        out_shape=jax.ShapeDtypeStruct((B, Tp, D), token_table.dtype),
        grid_spec=pltpu.PrefetchScalarGridSpec(
            num_scalar_prefetch=1,
            grid=grid,
            in_specs=[table_spec, pos_spec],
            out_specs=out_spec,
            scratch_shapes=[
                pltpu.VMEM((R, D), token_table.dtype),   # gathered rows
                pltpu.SemaphoreType.DMA((nsem,)),        # DMA window slots
            ],
        ),
        compiler_params=pltpu.CompilerParams(
            dimension_semantics=("parallel", "parallel"),
        ),
        cost_estimate=cost,
    )(ids_flat, token_table, pos)

    if Tp != T:
        out = out[:, :T, :]
    return out


if __name__ == "__main__":
    # Small shapes consistent with the module: CLIPEmbedding(n_vocab, n_embd, n_token)
    n_vocab, n_embd, n_token = 64, 32, 8
    batch = 2

    key = jax.random.PRNGKey(0)
    k_tok, k_tab, k_pos = jax.random.split(key, 3)

    # Deterministic synthetic parameters (nn.Embedding weight; position_embedding
    # is zeros in __init__, but small random values are used here to exercise the add).
    token_table = jax.random.normal(k_tab, (n_vocab, n_embd), dtype=jnp.float32)
    pos_embedding = 0.02 * jax.random.normal(k_pos, (n_token, n_embd), dtype=jnp.float32)
    tokens = jax.random.randint(k_tok, (batch, n_token), 0, n_vocab, dtype=jnp.int32)

    out = clip_embedding(tokens, token_table, pos_embedding)
    out = jax.block_until_ready(out)

    # Pure-JAX reference of the PyTorch forward: table[token] + position_embedding
    ref = token_table[tokens] + pos_embedding[None, :, :]
    assert out.shape == (batch, n_token, n_embd)
    assert jnp.allclose(out, ref, atol=1e-6, rtol=1e-6)

    print("KERNEL_OK")
</pallas_src>

<mosaic_0001>
module attributes {stable_mosaic.version = 11 : i64} {
  func.func @kernel(%arg0: i32, %arg1: i32, %arg2: memref<16xi32, #tpu.memory_space<smem>>, %arg3: memref<64x32xf32, #tpu.memory_space<any>>, %arg4: memref<8x32xf32, #tpu.memory_space<vmem>>, %arg5: memref<1x8x32xf32, #tpu.memory_space<vmem>>, %arg6: memref<8x32xf32, #tpu.memory_space<vmem>>, %arg7: memref<8x!tpu.dma_semaphore, #tpu.memory_space<semaphore_mem>>) attributes {dimension_semantics = [#tpu.dimension_semantics<parallel>, #tpu.dimension_semantics<parallel>], iteration_bounds = array<i64: 2, 1>, scalar_prefetch = 1 : i64, scratch_operands = 2 : i64, tpu.core_type = #tpu.core_type<tc>, window_params = [{}, {pipeline_mode = #tpu.pipeline_mode<synchronous>, transform_indices = @transform_1, window_bounds = array<i64: 8, 32>}, {transform_indices = @transform_2, window_bounds = array<i64: 1, 8, 32>}]} {
    %c8_i32 = arith.constant 8 : i32
    %0 = arith.muli %arg0, %c8_i32 : i32
    %c8_i32_0 = arith.constant 8 : i32
    %1 = arith.muli %arg1, %c8_i32_0 : i32
    %2 = arith.addi %0, %1 : i32
    %c0_i32 = arith.constant 0 : i32
    %3 = arith.addi %2, %c0_i32 : i32
    %4 = arith.index_cast %3 : i32 to index
    %5 = memref.load %arg2[%4] : memref<16xi32, #tpu.memory_space<smem>>
    %c8_i32_1 = arith.constant 8 : i32
    %c0_i32_2 = arith.constant 0 : i32
    %6 = arith.cmpi eq, %c8_i32_1, %c0_i32_2 : i32
    %c1_i32 = arith.constant 1 : i32
    %7 = arith.select %6, %c1_i32, %c8_i32_1 : i32
    %8 = arith.remsi %c0_i32, %7 : i32
    %c0_i32_3 = arith.constant 0 : i32
    %9 = arith.cmpi ne, %8, %c0_i32_3 : i32
    %c0_i32_4 = arith.constant 0 : i32
    %10 = arith.cmpi slt, %8, %c0_i32_4 : i32
    %c0_i32_5 = arith.constant 0 : i32
    %11 = arith.cmpi slt, %7, %c0_i32_5 : i32
    %12 = arith.xori %10, %11 : i1
    %13 = arith.andi %12, %9 : i1
    %14 = arith.addi %8, %7 : i32
    %15 = arith.select %13, %14, %8 : i32
    %c0_i32_6 = arith.constant 0 : i32
    %16 = tpu.memref_slice %arg3[%5, %c0_i32_6] : memref<64x32xf32, #tpu.memory_space<any>> -> memref<1x32xf32, #tpu.memory_space<any>>
    %c0_i32_7 = arith.constant 0 : i32
    %17 = tpu.memref_slice %arg6[%c0_i32, %c0_i32_7] : memref<8x32xf32, #tpu.memory_space<vmem>> -> memref<1x32xf32, #tpu.memory_space<vmem>>
    %18 = tpu.memref_slice %arg7[%15] : memref<8x!tpu.dma_semaphore, #tpu.memory_space<semaphore_mem>> -> memref<1x!tpu.dma_semaphore, #tpu.memory_space<semaphore_mem>>
    %19 = tpu.memref_squeeze %18 : memref<1x!tpu.dma_semaphore, #tpu.memory_space<semaphore_mem>> -> memref<!tpu.dma_semaphore, #tpu.memory_space<semaphore_mem>>
    tpu.enqueue_dma source(%16 : memref<1x32xf32, #tpu.memory_space<any>>) target(%17 : memref<1x32xf32, #tpu.memory_space<vmem>>) target_semaphore(%19 : memref<!tpu.dma_semaphore, #tpu.memory_space<semaphore_mem>>)
    %c1_i32_8 = arith.constant 1 : i32
    %20 = arith.addi %2, %c1_i32_8 : i32
    %21 = arith.index_cast %20 : i32 to index
    %22 = memref.load %arg2[%21] : memref<16xi32, #tpu.memory_space<smem>>
    %c8_i32_9 = arith.constant 8 : i32
    %c0_i32_10 = arith.constant 0 : i32
    %23 = arith.cmpi eq, %c8_i32_9, %c0_i32_10 : i32
    %c1_i32_11 = arith.constant 1 : i32
    %24 = arith.select %23, %c1_i32_11, %c8_i32_9 : i32
    %25 = arith.remsi %c1_i32_8, %24 : i32
    %c0_i32_12 = arith.constant 0 : i32
    %26 = arith.cmpi ne, %25, %c0_i32_12 : i32
    %c0_i32_13 = arith.constant 0 : i32
    %27 = arith.cmpi slt, %25, %c0_i32_13 : i32
    %c0_i32_14 = arith.constant 0 : i32
    %28 = arith.cmpi slt, %24, %c0_i32_14 : i32
    %29 = arith.xori %27, %28 : i1
    %30 = arith.andi %29, %26 : i1
    %31 = arith.addi %25, %24 : i32
    %32 = arith.select %30, %31, %25 : i32
    %c0_i32_15 = arith.constant 0 : i32
    %33 = tpu.memref_slice %arg3[%22, %c0_i32_15] : memref<64x32xf32, #tpu.memory_space<any>> -> memref<1x32xf32, #tpu.memory_space<any>>
    %c0_i32_16 = arith.constant 0 : i32
    %34 = tpu.memref_slice %arg6[%c1_i32_8, %c0_i32_16] : memref<8x32xf32, #tpu.memory_space<vmem>> -> memref<1x32xf32, #tpu.memory_space<vmem>>
    %35 = tpu.memref_slice %arg7[%32] : memref<8x!tpu.dma_semaphore, #tpu.memory_space<semaphore_mem>> -> memref<1x!tpu.dma_semaphore, #tpu.memory_space<semaphore_mem>>
    %36 = tpu.memref_squeeze %35 : memref<1x!tpu.dma_semaphore, #tpu.memory_space<semaphore_mem>> -> memref<!tpu.dma_semaphore, #tpu.memory_space<semaphore_mem>>
    tpu.enqueue_dma source(%33 : memref<1x32xf32, #tpu.memory_space<any>>) target(%34 : memref<1x32xf32, #tpu.memory_space<vmem>>) target_semaphore(%36 : memref<!tpu.dma_semaphore, #tpu.memory_space<semaphore_mem>>)
    %c2_i32 = arith.constant 2 : i32
    %37 = arith.addi %2, %c2_i32 : i32
    %38 = arith.index_cast %37 : i32 to index
    %39 = memref.load %arg2[%38] : memref<16xi32, #tpu.memory_space<smem>>
    %c8_i32_17 = arith.constant 8 : i32
    %c0_i32_18 = arith.constant 0 : i32
    %40 = arith.cmpi eq, %c8_i32_17, %c0_i32_18 : i32
    %c1_i32_19 = arith.constant 1 : i32
    %41 = arith.select %40, %c1_i32_19, %c8_i32_17 : i32
    %42 = arith.remsi %c2_i32, %41 : i32
    %c0_i32_20 = arith.constant 0 : i32
    %43 = arith.cmpi ne, %42, %c0_i32_20 : i32
    %c0_i32_21 = arith.constant 0 : i32
    %44 = arith.cmpi slt, %42, %c0_i32_21 : i32
    %c0_i32_22 = arith.constant 0 : i32
    %45 = arith.cmpi slt, %41, %c0_i32_22 : i32
    %46 = arith.xori %44, %45 : i1
    %47 = arith.andi %46, %43 : i1
    %48 = arith.addi %42, %41 : i32
    %49 = arith.select %47, %48, %42 : i32
    %c0_i32_23 = arith.constant 0 : i32
    %50 = tpu.memref_slice %arg3[%39, %c0_i32_23] : memref<64x32xf32, #tpu.memory_space<any>> -> memref<1x32xf32, #tpu.memory_space<any>>
    %c0_i32_24 = arith.constant 0 : i32
    %51 = tpu.memref_slice %arg6[%c2_i32, %c0_i32_24] : memref<8x32xf32, #tpu.memory_space<vmem>> -> memref<1x32xf32, #tpu.memory_space<vmem>>
    %52 = tpu.memref_slice %arg7[%49] : memref<8x!tpu.dma_semaphore, #tpu.memory_space<semaphore_mem>> -> memref<1x!tpu.dma_semaphore, #tpu.memory_space<semaphore_mem>>
    %53 = tpu.memref_squeeze %52 : memref<1x!tpu.dma_semaphore, #tpu.memory_space<semaphore_mem>> -> memref<!tpu.dma_semaphore, #tpu.memory_space<semaphore_mem>>
    tpu.enqueue_dma source(%50 : memref<1x32xf32, #tpu.memory_space<any>>) target(%51 : memref<1x32xf32, #tpu.memory_space<vmem>>) target_semaphore(%53 : memref<!tpu.dma_semaphore, #tpu.memory_space<semaphore_mem>>)
    %c3_i32 = arith.constant 3 : i32
    %54 = arith.addi %2, %c3_i32 : i32
    %55 = arith.index_cast %54 : i32 to index
    %56 = memref.load %arg2[%55] : memref<16xi32, #tpu.memory_space<smem>>
    %c8_i32_25 = arith.constant 8 : i32
    %c0_i32_26 = arith.constant 0 : i32
    %57 = arith.cmpi eq, %c8_i32_25, %c0_i32_26 : i32
    %c1_i32_27 = arith.constant 1 : i32
    %58 = arith.select %57, %c1_i32_27, %c8_i32_25 : i32
    %59 = arith.remsi %c3_i32, %58 : i32
    %c0_i32_28 = arith.constant 0 : i32
    %60 = arith.cmpi ne, %59, %c0_i32_28 : i32
    %c0_i32_29 = arith.constant 0 : i32
    %61 = arith.cmpi slt, %59, %c0_i32_29 : i32
    %c0_i32_30 = arith.constant 0 : i32
    %62 = arith.cmpi slt, %58, %c0_i32_30 : i32
    %63 = arith.xori %61, %62 : i1
    %64 = arith.andi %63, %60 : i1
    %65 = arith.addi %59, %58 : i32
    %66 = arith.select %64, %65, %59 : i32
    %c0_i32_31 = arith.constant 0 : i32
    %67 = tpu.memref_slice %arg3[%56, %c0_i32_31] : memref<64x32xf32, #tpu.memory_space<any>> -> memref<1x32xf32, #tpu.memory_space<any>>
    %c0_i32_32 = arith.constant 0 : i32
    %68 = tpu.memref_slice %arg6[%c3_i32, %c0_i32_32] : memref<8x32xf32, #tpu.memory_space<vmem>> -> memref<1x32xf32, #tpu.memory_space<vmem>>
    %69 = tpu.memref_slice %arg7[%66] : memref<8x!tpu.dma_semaphore, #tpu.memory_space<semaphore_mem>> -> memref<1x!tpu.dma_semaphore, #tpu.memory_space<semaphore_mem>>
    %70 = tpu.memref_squeeze %69 : memref<1x!tpu.dma_semaphore, #tpu.memory_space<semaphore_mem>> -> memref<!tpu.dma_semaphore, #tpu.memory_space<semaphore_mem>>
    tpu.enqueue_dma source(%67 : memref<1x32xf32, #tpu.memory_space<any>>) target(%68 : memref<1x32xf32, #tpu.memory_space<vmem>>) target_semaphore(%70 : memref<!tpu.dma_semaphore, #tpu.memory_space<semaphore_mem>>)
    %c4_i32 = arith.constant 4 : i32
    %71 = arith.addi %2, %c4_i32 : i32
    %72 = arith.index_cast %71 : i32 to index
    %73 = memref.load %arg2[%72] : memref<16xi32, #tpu.memory_space<smem>>
    %c8_i32_33 = arith.constant 8 : i32
    %c0_i32_34 = arith.constant 0 : i32
    %74 = arith.cmpi eq, %c8_i32_33, %c0_i32_34 : i32
    %c1_i32_35 = arith.constant 1 : i32
    %75 = arith.select %74, %c1_i32_35, %c8_i32_33 : i32
    %76 = arith.remsi %c4_i32, %75 : i32
    %c0_i32_36 = arith.constant 0 : i32
    %77 = arith.cmpi ne, %76, %c0_i32_36 : i32
    %c0_i32_37 = arith.constant 0 : i32
    %78 = arith.cmpi slt, %76, %c0_i32_37 : i32
    %c0_i32_38 = arith.constant 0 : i32
    %79 = arith.cmpi slt, %75, %c0_i32_38 : i32
    %80 = arith.xori %78, %79 : i1
    %81 = arith.andi %80, %77 : i1
    %82 = arith.addi %76, %75 : i32
    %83 = arith.select %81, %82, %76 : i32
    %c0_i32_39 = arith.constant 0 : i32
    %84 = tpu.memref_slice %arg3[%73, %c0_i32_39] : memref<64x32xf32, #tpu.memory_space<any>> -> memref<1x32xf32, #tpu.memory_space<any>>
    %c0_i32_40 = arith.constant 0 : i32
    %85 = tpu.memref_slice %arg6[%c4_i32, %c0_i32_40] : memref<8x32xf32, #tpu.memory_space<vmem>> -> memref<1x32xf32, #tpu.memory_space<vmem>>
    %86 = tpu.memref_slice %arg7[%83] : memref<8x!tpu.dma_semaphore, #tpu.memory_space<semaphore_mem>> -> memref<1x!tpu.dma_semaphore, #tpu.memory_space<semaphore_mem>>
    %87 = tpu.memref_squeeze %86 : memref<1x!tpu.dma_semaphore, #tpu.memory_space<semaphore_mem>> -> memref<!tpu.dma_semaphore, #tpu.memory_space<semaphore_mem>>
    tpu.enqueue_dma source(%84 : memref<1x32xf32, #tpu.memory_space<any>>) target(%85 : memref<1x32xf32, #tpu.memory_space<vmem>>) target_semaphore(%87 : memref<!tpu.dma_semaphore, #tpu.memory_space<semaphore_mem>>)
    %c5_i32 = arith.constant 5 : i32
    %88 = arith.addi %2, %c5_i32 : i32
    %89 = arith.index_cast %88 : i32 to index
    %90 = memref.load %arg2[%89] : memref<16xi32, #tpu.memory_space<smem>>
    %c8_i32_41 = arith.constant 8 : i32
    %c0_i32_42 = arith.constant 0 : i32
    %91 = arith.cmpi eq, %c8_i32_41, %c0_i32_42 : i32
    %c1_i32_43 = arith.constant 1 : i32
    %92 = arith.select %91, %c1_i32_43, %c8_i32_41 : i32
    %93 = arith.remsi %c5_i32, %92 : i32
    %c0_i32_44 = arith.constant 0 : i32
    %94 = arith.cmpi ne, %93, %c0_i32_44 : i32
    %c0_i32_45 = arith.constant 0 : i32
    %95 = arith.cmpi slt, %93, %c0_i32_45 : i32
    %c0_i32_46 = arith.constant 0 : i32
    %96 = arith.cmpi slt, %92, %c0_i32_46 : i32
    %97 = arith.xori %95, %96 : i1
    %98 = arith.andi %97, %94 : i1
    %99 = arith.addi %93, %92 : i32
    %100 = arith.select %98, %99, %93 : i32
    %c0_i32_47 = arith.constant 0 : i32
    %101 = tpu.memref_slice %arg3[%90, %c0_i32_47] : memref<64x32xf32, #tpu.memory_space<any>> -> memref<1x32xf32, #tpu.memory_space<any>>
    %c0_i32_48 = arith.constant 0 : i32
    %102 = tpu.memref_slice %arg6[%c5_i32, %c0_i32_48] : memref<8x32xf32, #tpu.memory_space<vmem>> -> memref<1x32xf32, #tpu.memory_space<vmem>>
    %103 = tpu.memref_slice %arg7[%100] : memref<8x!tpu.dma_semaphore, #tpu.memory_space<semaphore_mem>> -> memref<1x!tpu.dma_semaphore, #tpu.memory_space<semaphore_mem>>
    %104 = tpu.memref_squeeze %103 : memref<1x!tpu.dma_semaphore, #tpu.memory_space<semaphore_mem>> -> memref<!tpu.dma_semaphore, #tpu.memory_space<semaphore_mem>>
    tpu.enqueue_dma source(%101 : memref<1x32xf32, #tpu.memory_space<any>>) target(%102 : memref<1x32xf32, #tpu.memory_space<vmem>>) target_semaphore(%104 : memref<!tpu.dma_semaphore, #tpu.memory_space<semaphore_mem>>)
    %c6_i32 = arith.constant 6 : i32
    %105 = arith.addi %2, %c6_i32 : i32
    %106 = arith.index_cast %105 : i32 to index
    %107 = memref.load %arg2[%106] : memref<16xi32, #tpu.memory_space<smem>>
    %c8_i32_49 = arith.constant 8 : i32
    %c0_i32_50 = arith.constant 0 : i32
    %108 = arith.cmpi eq, %c8_i32_49, %c0_i32_50 : i32
    %c1_i32_51 = arith.constant 1 : i32
    %109 = arith.select %108, %c1_i32_51, %c8_i32_49 : i32
    %110 = arith.remsi %c6_i32, %109 : i32
    %c0_i32_52 = arith.constant 0 : i32
    %111 = arith.cmpi ne, %110, %c0_i32_52 : i32
    %c0_i32_53 = arith.constant 0 : i32
    %112 = arith.cmpi slt, %110, %c0_i32_53 : i32
    %c0_i32_54 = arith.constant 0 : i32
    %113 = arith.cmpi slt, %109, %c0_i32_54 : i32
    %114 = arith.xori %112, %113 : i1
    %115 = arith.andi %114, %111 : i1
    %116 = arith.addi %110, %109 : i32
    %117 = arith.select %115, %116, %110 : i32
    %c0_i32_55 = arith.constant 0 : i32
    %118 = tpu.memref_slice %arg3[%107, %c0_i32_55] : memref<64x32xf32, #tpu.memory_space<any>> -> memref<1x32xf32, #tpu.memory_space<any>>
    %c0_i32_56 = arith.constant 0 : i32
    %119 = tpu.memref_slice %arg6[%c6_i32, %c0_i32_56] : memref<8x32xf32, #tpu.memory_space<vmem>> -> memref<1x32xf32, #tpu.memory_space<vmem>>
    %120 = tpu.memref_slice %arg7[%117] : memref<8x!tpu.dma_semaphore, #tpu.memory_space<semaphore_mem>> -> memref<1x!tpu.dma_semaphore, #tpu.memory_space<semaphore_mem>>
    %121 = tpu.memref_squeeze %120 : memref<1x!tpu.dma_semaphore, #tpu.memory_space<semaphore_mem>> -> memref<!tpu.dma_semaphore, #tpu.memory_space<semaphore_mem>>
    tpu.enqueue_dma source(%118 : memref<1x32xf32, #tpu.memory_space<any>>) target(%119 : memref<1x32xf32, #tpu.memory_space<vmem>>) target_semaphore(%121 : memref<!tpu.dma_semaphore, #tpu.memory_space<semaphore_mem>>)
    %c7_i32 = arith.constant 7 : i32
    %122 = arith.addi %2, %c7_i32 : i32
    %123 = arith.index_cast %122 : i32 to index
    %124 = memref.load %arg2[%123] : memref<16xi32, #tpu.memory_space<smem>>
    %c8_i32_57 = arith.constant 8 : i32
    %c0_i32_58 = arith.constant 0 : i32
    %125 = arith.cmpi eq, %c8_i32_57, %c0_i32_58 : i32
    %c1_i32_59 = arith.constant 1 : i32
    %126 = arith.select %125, %c1_i32_59, %c8_i32_57 : i32
    %127 = arith.remsi %c7_i32, %126 : i32
    %c0_i32_60 = arith.constant 0 : i32
    %128 = arith.cmpi ne, %127, %c0_i32_60 : i32
    %c0_i32_61 = arith.constant 0 : i32
    %129 = arith.cmpi slt, %127, %c0_i32_61 : i32
    %c0_i32_62 = arith.constant 0 : i32
    %130 = arith.cmpi slt, %126, %c0_i32_62 : i32
    %131 = arith.xori %129, %130 : i1
    %132 = arith.andi %131, %128 : i1
    %133 = arith.addi %127, %126 : i32
    %134 = arith.select %132, %133, %127 : i32
    %c0_i32_63 = arith.constant 0 : i32
    %135 = tpu.memref_slice %arg3[%124, %c0_i32_63] : memref<64x32xf32, #tpu.memory_space<any>> -> memref<1x32xf32, #tpu.memory_space<any>>
    %c0_i32_64 = arith.constant 0 : i32
    %136 = tpu.memref_slice %arg6[%c7_i32, %c0_i32_64] : memref<8x32xf32, #tpu.memory_space<vmem>> -> memref<1x32xf32, #tpu.memory_space<vmem>>
    %137 = tpu.memref_slice %arg7[%134] : memref<8x!tpu.dma_semaphore, #tpu.memory_space<semaphore_mem>> -> memref<1x!tpu.dma_semaphore, #tpu.memory_space<semaphore_mem>>
    %138 = tpu.memref_squeeze %137 : memref<1x!tpu.dma_semaphore, #tpu.memory_space<semaphore_mem>> -> memref<!tpu.dma_semaphore, #tpu.memory_space<semaphore_mem>>
    tpu.enqueue_dma source(%135 : memref<1x32xf32, #tpu.memory_space<any>>) target(%136 : memref<1x32xf32, #tpu.memory_space<vmem>>) target_semaphore(%138 : memref<!tpu.dma_semaphore, #tpu.memory_space<semaphore_mem>>)
    %c8_i32_65 = arith.constant 8 : i32
    %c0_i32_66 = arith.constant 0 : i32
    %139 = arith.addi %2, %c0_i32_66 : i32
    %140 = arith.index_cast %139 : i32 to index
    %141 = memref.load %arg2[%140] : memref<16xi32, #tpu.memory_space<smem>>
    %c8_i32_67 = arith.constant 8 : i32
    %c0_i32_68 = arith.constant 0 : i32
    %142 = arith.cmpi eq, %c8_i32_67, %c0_i32_68 : i32
    %c1_i32_69 = arith.constant 1 : i32
    %143 = arith.select %142, %c1_i32_69, %c8_i32_67 : i32
    %144 = arith.remsi %c0_i32_66, %143 : i32
    %c0_i32_70 = arith.constant 0 : i32
    %145 = arith.cmpi ne, %144, %c0_i32_70 : i32
    %c0_i32_71 = arith.constant 0 : i32
    %146 = arith.cmpi slt, %144, %c0_i32_71 : i32
    %c0_i32_72 = arith.constant 0 : i32
    %147 = arith.cmpi slt, %143, %c0_i32_72 : i32
    %148 = arith.xori %146, %147 : i1
    %149 = arith.andi %148, %145 : i1
    %150 = arith.addi %144, %143 : i32
    %151 = arith.select %149, %150, %144 : i32
    %c0_i32_73 = arith.constant 0 : i32
    %152 = tpu.memref_slice %arg3[%141, %c0_i32_73] : memref<64x32xf32, #tpu.memory_space<any>> -> memref<1x32xf32, #tpu.memory_space<any>>
    %c0_i32_74 = arith.constant 0 : i32
    %153 = tpu.memref_slice %arg6[%c0_i32_66, %c0_i32_74] : memref<8x32xf32, #tpu.memory_space<vmem>> -> memref<1x32xf32, #tpu.memory_space<vmem>>
    %154 = tpu.memref_slice %arg7[%151] : memref<8x!tpu.dma_semaphore, #tpu.memory_space<semaphore_mem>> -> memref<1x!tpu.dma_semaphore, #tpu.memory_space<semaphore_mem>>
    %155 = tpu.memref_squeeze %154 : memref<1x!tpu.dma_semaphore, #tpu.memory_space<semaphore_mem>> -> memref<!tpu.dma_semaphore, #tpu.memory_space<semaphore_mem>>
    tpu.wait_dma2 semaphore(%155 : memref<!tpu.dma_semaphore, #tpu.memory_space<semaphore_mem>>) src(%152 : memref<1x32xf32, #tpu.memory_space<any>>) dst(%153 : memref<1x32xf32, #tpu.memory_space<vmem>>)
    %c1_i32_75 = arith.constant 1 : i32
    %156 = arith.addi %2, %c1_i32_75 : i32
    %157 = arith.index_cast %156 : i32 to index
    %158 = memref.load %arg2[%157] : memref<16xi32, #tpu.memory_space<smem>>
    %c8_i32_76 = arith.constant 8 : i32
    %c0_i32_77 = arith.constant 0 : i32
    %159 = arith.cmpi eq, %c8_i32_76, %c0_i32_77 : i32
    %c1_i32_78 = arith.constant 1 : i32
    %160 = arith.select %159, %c1_i32_78, %c8_i32_76 : i32
    %161 = arith.remsi %c1_i32_75, %160 : i32
    %c0_i32_79 = arith.constant 0 : i32
    %162 = arith.cmpi ne, %161, %c0_i32_79 : i32
    %c0_i32_80 = arith.constant 0 : i32
    %163 = arith.cmpi slt, %161, %c0_i32_80 : i32
    %c0_i32_81 = arith.constant 0 : i32
    %164 = arith.cmpi slt, %160, %c0_i32_81 : i32
    %165 = arith.xori %163, %164 : i1
    %166 = arith.andi %165, %162 : i1
    %167 = arith.addi %161, %160 : i32
    %168 = arith.select %166, %167, %161 : i32
    %c0_i32_82 = arith.constant 0 : i32
    %169 = tpu.memref_slice %arg3[%158, %c0_i32_82] : memref<64x32xf32, #tpu.memory_space<any>> -> memref<1x32xf32, #tpu.memory_space<any>>
    %c0_i32_83 = arith.constant 0 : i32
    %170 = tpu.memref_slice %arg6[%c1_i32_75, %c0_i32_83] : memref<8x32xf32, #tpu.memory_space<vmem>> -> memref<1x32xf32, #tpu.memory_space<vmem>>
    %171 = tpu.memref_slice %arg7[%168] : memref<8x!tpu.dma_semaphore, #tpu.memory_space<semaphore_mem>> -> memref<1x!tpu.dma_semaphore, #tpu.memory_space<semaphore_mem>>
    %172 = tpu.memref_squeeze %171 : memref<1x!tpu.dma_semaphore, #tpu.memory_space<semaphore_mem>> -> memref<!tpu.dma_semaphore, #tpu.memory_space<semaphore_mem>>
    tpu.wait_dma2 semaphore(%172 : memref<!tpu.dma_semaphore, #tpu.memory_space<semaphore_mem>>) src(%169 : memref<1x32xf32, #tpu.memory_space<any>>) dst(%170 : memref<1x32xf32, #tpu.memory_space<vmem>>)
    %c2_i32_84 = arith.constant 2 : i32
    %173 = arith.addi %2, %c2_i32_84 : i32
    %174 = arith.index_cast %173 : i32 to index
    %175 = memref.load %arg2[%174] : memref<16xi32, #tpu.memory_space<smem>>
    %c8_i32_85 = arith.constant 8 : i32
    %c0_i32_86 = arith.constant 0 : i32
    %176 = arith.cmpi eq, %c8_i32_85, %c0_i32_86 : i32
    %c1_i32_87 = arith.constant 1 : i32
    %177 = arith.select %176, %c1_i32_87, %c8_i32_85 : i32
    %178 = arith.remsi %c2_i32_84, %177 : i32
    %c0_i32_88 = arith.constant 0 : i32
    %179 = arith.cmpi ne, %178, %c0_i32_88 : i32
    %c0_i32_89 = arith.constant 0 : i32
    %180 = arith.cmpi slt, %178, %c0_i32_89 : i32
    %c0_i32_90 = arith.constant 0 : i32
    %181 = arith.cmpi slt, %177, %c0_i32_90 : i32
    %182 = arith.xori %180, %181 : i1
    %183 = arith.andi %182, %179 : i1
    %184 = arith.addi %178, %177 : i32
    %185 = arith.select %183, %184, %178 : i32
    %c0_i32_91 = arith.constant 0 : i32
    %186 = tpu.memref_slice %arg3[%175, %c0_i32_91] : memref<64x32xf32, #tpu.memory_space<any>> -> memref<1x32xf32, #tpu.memory_space<any>>
    %c0_i32_92 = arith.constant 0 : i32
    %187 = tpu.memref_slice %arg6[%c2_i32_84, %c0_i32_92] : memref<8x32xf32, #tpu.memory_space<vmem>> -> memref<1x32xf32, #tpu.memory_space<vmem>>
    %188 = tpu.memref_slice %arg7[%185] : memref<8x!tpu.dma_semaphore, #tpu.memory_space<semaphore_mem>> -> memref<1x!tpu.dma_semaphore, #tpu.memory_space<semaphore_mem>>
    %189 = tpu.memref_squeeze %188 : memref<1x!tpu.dma_semaphore, #tpu.memory_space<semaphore_mem>> -> memref<!tpu.dma_semaphore, #tpu.memory_space<semaphore_mem>>
    tpu.wait_dma2 semaphore(%189 : memref<!tpu.dma_semaphore, #tpu.memory_space<semaphore_mem>>) src(%186 : memref<1x32xf32, #tpu.memory_space<any>>) dst(%187 : memref<1x32xf32, #tpu.memory_space<vmem>>)
    %c3_i32_93 = arith.constant 3 : i32
    %190 = arith.addi %2, %c3_i32_93 : i32
    %191 = arith.index_cast %190 : i32 to index
    %192 = memref.load %arg2[%191] : memref<16xi32, #tpu.memory_space<smem>>
    %c8_i32_94 = arith.constant 8 : i32
    %c0_i32_95 = arith.constant 0 : i32
    %193 = arith.cmpi eq, %c8_i32_94, %c0_i32_95 : i32
    %c1_i32_96 = arith.constant 1 : i32
    %194 = arith.select %193, %c1_i32_96, %c8_i32_94 : i32
    %195 = arith.remsi %c3_i32_93, %194 : i32
    %c0_i32_97 = arith.constant 0 : i32
    %196 = arith.cmpi ne, %195, %c0_i32_97 : i32
    %c0_i32_98 = arith.constant 0 : i32
    %197 = arith.cmpi slt, %195, %c0_i32_98 : i32
    %c0_i32_99 = arith.constant 0 : i32
    %198 = arith.cmpi slt, %194, %c0_i32_99 : i32
    %199 = arith.xori %197, %198 : i1
    %200 = arith.andi %199, %196 : i1
    %201 = arith.addi %195, %194 : i32
    %202 = arith.select %200, %201, %195 : i32
    %c0_i32_100 = arith.constant 0 : i32
    %203 = tpu.memref_slice %arg3[%192, %c0_i32_100] : memref<64x32xf32, #tpu.memory_space<any>> -> memref<1x32xf32, #tpu.memory_space<any>>
    %c0_i32_101 = arith.constant 0 : i32
    %204 = tpu.memref_slice %arg6[%c3_i32_93, %c0_i32_101] : memref<8x32xf32, #tpu.memory_space<vmem>> -> memref<1x32xf32, #tpu.memory_space<vmem>>
    %205 = tpu.memref_slice %arg7[%202] : memref<8x!tpu.dma_semaphore, #tpu.memory_space<semaphore_mem>> -> memref<1x!tpu.dma_semaphore, #tpu.memory_space<semaphore_mem>>
    %206 = tpu.memref_squeeze %205 : memref<1x!tpu.dma_semaphore, #tpu.memory_space<semaphore_mem>> -> memref<!tpu.dma_semaphore, #tpu.memory_space<semaphore_mem>>
    tpu.wait_dma2 semaphore(%206 : memref<!tpu.dma_semaphore, #tpu.memory_space<semaphore_mem>>) src(%203 : memref<1x32xf32, #tpu.memory_space<any>>) dst(%204 : memref<1x32xf32, #tpu.memory_space<vmem>>)
    %c4_i32_102 = arith.constant 4 : i32
    %207 = arith.addi %2, %c4_i32_102 : i32
    %208 = arith.index_cast %207 : i32 to index
    %209 = memref.load %arg2[%208] : memref<16xi32, #tpu.memory_space<smem>>
    %c8_i32_103 = arith.constant 8 : i32
    %c0_i32_104 = arith.constant 0 : i32
    %210 = arith.cmpi eq, %c8_i32_103, %c0_i32_104 : i32
    %c1_i32_105 = arith.constant 1 : i32
    %211 = arith.select %210, %c1_i32_105, %c8_i32_103 : i32
    %212 = arith.remsi %c4_i32_102, %211 : i32
    %c0_i32_106 = arith.constant 0 : i32
    %213 = arith.cmpi ne, %212, %c0_i32_106 : i32
    %c0_i32_107 = arith.constant 0 : i32
    %214 = arith.cmpi slt, %212, %c0_i32_107 : i32
    %c0_i32_108 = arith.constant 0 : i32
    %215 = arith.cmpi slt, %211, %c0_i32_108 : i32
    %216 = arith.xori %214, %215 : i1
    %217 = arith.andi %216, %213 : i1
    %218 = arith.addi %212, %211 : i32
    %219 = arith.select %217, %218, %212 : i32
    %c0_i32_109 = arith.constant 0 : i32
    %220 = tpu.memref_slice %arg3[%209, %c0_i32_109] : memref<64x32xf32, #tpu.memory_space<any>> -> memref<1x32xf32, #tpu.memory_space<any>>
    %c0_i32_110 = arith.constant 0 : i32
    %221 = tpu.memref_slice %arg6[%c4_i32_102, %c0_i32_110] : memref<8x32xf32, #tpu.memory_space<vmem>> -> memref<1x32xf32, #tpu.memory_space<vmem>>
    %222 = tpu.memref_slice %arg7[%219] : memref<8x!tpu.dma_semaphore, #tpu.memory_space<semaphore_mem>> -> memref<1x!tpu.dma_semaphore, #tpu.memory_space<semaphore_mem>>
    %223 = tpu.memref_squeeze %222 : memref<1x!tpu.dma_semaphore, #tpu.memory_space<semaphore_mem>> -> memref<!tpu.dma_semaphore, #tpu.memory_space<semaphore_mem>>
    tpu.wait_dma2 semaphore(%223 : memref<!tpu.dma_semaphore, #tpu.memory_space<semaphore_mem>>) src(%220 : memref<1x32xf32, #tpu.memory_space<any>>) dst(%221 : memref<1x32xf32, #tpu.memory_space<vmem>>)
    %c5_i32_111 = arith.constant 5 : i32
    %224 = arith.addi %2, %c5_i32_111 : i32
    %225 = arith.index_cast %224 : i32 to index
    %226 = memref.load %arg2[%225] : memref<16xi32, #tpu.memory_space<smem>>
    %c8_i32_112 = arith.constant 8 : i32
    %c0_i32_113 = arith.constant 0 : i32
    %227 = arith.cmpi eq, %c8_i32_112, %c0_i32_113 : i32
    %c1_i32_114 = arith.constant 1 : i32
    %228 = arith.select %227, %c1_i32_114, %c8_i32_112 : i32
    %229 = arith.remsi %c5_i32_111, %228 : i32
    %c0_i32_115 = arith.constant 0 : i32
    %230 = arith.cmpi ne, %229, %c0_i32_115 : i32
    %c0_i32_116 = arith.constant 0 : i32
    %231 = arith.cmpi slt, %229, %c0_i32_116 : i32
    %c0_i32_117 = arith.constant 0 : i32
    %232 = arith.cmpi slt, %228, %c0_i32_117 : i32
    %233 = arith.xori %231, %232 : i1
    %234 = arith.andi %233, %230 : i1
    %235 = arith.addi %229, %228 : i32
    %236 = arith.select %234, %235, %229 : i32
    %c0_i32_118 = arith.constant 0 : i32
    %237 = tpu.memref_slice %arg3[%226, %c0_i32_118] : memref<64x32xf32, #tpu.memory_space<any>> -> memref<1x32xf32, #tpu.memory_space<any>>
    %c0_i32_119 = arith.constant 0 : i32
    %238 = tpu.memref_slice %arg6[%c5_i32_111, %c0_i32_119] : memref<8x32xf32, #tpu.memory_space<vmem>> -> memref<1x32xf32, #tpu.memory_space<vmem>>
    %239 = tpu.memref_slice %arg7[%236] : memref<8x!tpu.dma_semaphore, #tpu.memory_space<semaphore_mem>> -> memref<1x!tpu.dma_semaphore, #tpu.memory_space<semaphore_mem>>
    %240 = tpu.memref_squeeze %239 : memref<1x!tpu.dma_semaphore, #tpu.memory_space<semaphore_mem>> -> memref<!tpu.dma_semaphore, #tpu.memory_space<semaphore_mem>>
    tpu.wait_dma2 semaphore(%240 : memref<!tpu.dma_semaphore, #tpu.memory_space<semaphore_mem>>) src(%237 : memref<1x32xf32, #tpu.memory_space<any>>) dst(%238 : memref<1x32xf32, #tpu.memory_space<vmem>>)
    %c6_i32_120 = arith.constant 6 : i32
    %241 = arith.addi %2, %c6_i32_120 : i32
    %242 = arith.index_cast %241 : i32 to index
    %243 = memref.load %arg2[%242] : memref<16xi32, #tpu.memory_space<smem>>
    %c8_i32_121 = arith.constant 8 : i32
    %c0_i32_122 = arith.constant 0 : i32
    %244 = arith.cmpi eq, %c8_i32_121, %c0_i32_122 : i32
    %c1_i32_123 = arith.constant 1 : i32
    %245 = arith.select %244, %c1_i32_123, %c8_i32_121 : i32
    %246 = arith.remsi %c6_i32_120, %245 : i32
    %c0_i32_124 = arith.constant 0 : i32
    %247 = arith.cmpi ne, %246, %c0_i32_124 : i32
    %c0_i32_125 = arith.constant 0 : i32
    %248 = arith.cmpi slt, %246, %c0_i32_125 : i32
    %c0_i32_126 = arith.constant 0 : i32
    %249 = arith.cmpi slt, %245, %c0_i32_126 : i32
    %250 = arith.xori %248, %249 : i1
    %251 = arith.andi %250, %247 : i1
    %252 = arith.addi %246, %245 : i32
    %253 = arith.select %251, %252, %246 : i32
    %c0_i32_127 = arith.constant 0 : i32
    %254 = tpu.memref_slice %arg3[%243, %c0_i32_127] : memref<64x32xf32, #tpu.memory_space<any>> -> memref<1x32xf32, #tpu.memory_space<any>>
    %c0_i32_128 = arith.constant 0 : i32
    %255 = tpu.memref_slice %arg6[%c6_i32_120, %c0_i32_128] : memref<8x32xf32, #tpu.memory_space<vmem>> -> memref<1x32xf32, #tpu.memory_space<vmem>>
    %256 = tpu.memref_slice %arg7[%253] : memref<8x!tpu.dma_semaphore, #tpu.memory_space<semaphore_mem>> -> memref<1x!tpu.dma_semaphore, #tpu.memory_space<semaphore_mem>>
    %257 = tpu.memref_squeeze %256 : memref<1x!tpu.dma_semaphore, #tpu.memory_space<semaphore_mem>> -> memref<!tpu.dma_semaphore, #tpu.memory_space<semaphore_mem>>
    tpu.wait_dma2 semaphore(%257 : memref<!tpu.dma_semaphore, #tpu.memory_space<semaphore_mem>>) src(%254 : memref<1x32xf32, #tpu.memory_space<any>>) dst(%255 : memref<1x32xf32, #tpu.memory_space<vmem>>)
    %c7_i32_129 = arith.constant 7 : i32
    %258 = arith.addi %2, %c7_i32_129 : i32
    %259 = arith.index_cast %258 : i32 to index
    %260 = memref.load %arg2[%259] : memref<16xi32, #tpu.memory_space<smem>>
    %c8_i32_130 = arith.constant 8 : i32
    %c0_i32_131 = arith.constant 0 : i32
    %261 = arith.cmpi eq, %c8_i32_130, %c0_i32_131 : i32
    %c1_i32_132 = arith.constant 1 : i32
    %262 = arith.select %261, %c1_i32_132, %c8_i32_130 : i32
    %263 = arith.remsi %c7_i32_129, %262 : i32
    %c0_i32_133 = arith.constant 0 : i32
    %264 = arith.cmpi ne, %263, %c0_i32_133 : i32
    %c0_i32_134 = arith.constant 0 : i32
    %265 = arith.cmpi slt, %263, %c0_i32_134 : i32
    %c0_i32_135 = arith.constant 0 : i32
    %266 = arith.cmpi slt, %262, %c0_i32_135 : i32
    %267 = arith.xori %265, %266 : i1
    %268 = arith.andi %267, %264 : i1
    %269 = arith.addi %263, %262 : i32
    %270 = arith.select %268, %269, %263 : i32
    %c0_i32_136 = arith.constant 0 : i32
    %271 = tpu.memref_slice %arg3[%260, %c0_i32_136] : memref<64x32xf32, #tpu.memory_space<any>> -> memref<1x32xf32, #tpu.memory_space<any>>
    %c0_i32_137 = arith.constant 0 : i32
    %272 = tpu.memref_slice %arg6[%c7_i32_129, %c0_i32_137] : memref<8x32xf32, #tpu.memory_space<vmem>> -> memref<1x32xf32, #tpu.memory_space<vmem>>
    %273 = tpu.memref_slice %arg7[%270] : memref<8x!tpu.dma_semaphore, #tpu.memory_space<semaphore_mem>> -> memref<1x!tpu.dma_semaphore, #tpu.memory_space<semaphore_mem>>
    %274 = tpu.memref_squeeze %273 : memref<1x!tpu.dma_semaphore, #tpu.memory_space<semaphore_mem>> -> memref<!tpu.dma_semaphore, #tpu.memory_space<semaphore_mem>>
    tpu.wait_dma2 semaphore(%274 : memref<!tpu.dma_semaphore, #tpu.memory_space<semaphore_mem>>) src(%271 : memref<1x32xf32, #tpu.memory_space<any>>) dst(%272 : memref<1x32xf32, #tpu.memory_space<vmem>>)
    %c8_i32_138 = arith.constant 8 : i32
    %c0 = arith.constant 0 : index
    %c0_139 = arith.constant 0 : index
    %275 = vector.load %arg4[%c0, %c0_139] : memref<8x32xf32, #tpu.memory_space<vmem>>, vector<8x32xf32>
    %c0_140 = arith.constant 0 : index
    %c0_141 = arith.constant 0 : index
    %276 = vector.load %arg6[%c0_140, %c0_141] : memref<8x32xf32, #tpu.memory_space<vmem>>, vector<8x32xf32>
    %277 = arith.addf %276, %275 : vector<8x32xf32>
    %c0_142 = arith.constant 0 : index
    %c0_143 = arith.constant 0 : index
    %c0_144 = arith.constant 0 : index
    %278 = vector.load %arg5[%c0_142, %c0_143, %c0_144] : memref<1x8x32xf32, #tpu.memory_space<vmem>>, vector<1x8x32xf32>
    %279 = vector.shape_cast %278 : vector<1x8x32xf32> to vector<8x32xf32>
    %280 = vector.shape_cast %277 : vector<8x32xf32> to vector<1x8x32xf32>
    tpu.vector_store %arg5[%c0_142, %c0_143, %c0_144], %280 {strides = array<i32>} : memref<1x8x32xf32, #tpu.memory_space<vmem>>, vector<1x8x32xf32>,
    return
  }
  func.func @transform_1(%arg0: i32, %arg1: i32, %arg2: memref<16xi32, #tpu.memory_space<smem>>) -> (i32, i32) {
    %c0_i32 = arith.constant 0 : i32
    %c0_i32_0 = arith.constant 0 : i32
    %c0_i32_1 = arith.constant 0 : i32
    return %c0_i32, %c0_i32_0 : i32, i32
  }
  func.func @transform_2(%arg0: i32, %arg1: i32, %arg2: memref<16xi32, #tpu.memory_space<smem>>) -> (i32, i32, i32) {
    %c0_i32 = arith.constant 0 : i32
    %c0_i32_0 = arith.constant 0 : i32
    return %arg0, %arg1, %c0_i32 : i32, i32, i32
  }
}

</mosaic_0001>

<llo_original>
// kernel: tpu_custom_call.1
$region0: #{tpu_custom_call.1}
  #allocation0 [shape = 'u32[]', space=smem, size = 0x4, offset = 0x4, fixed_abs, tag = 'smem constant byte address 0x4 - core index']
  #allocation1 [shape = 'u32[72,128]{1,0:T(1,128)}', space=vmem, size = 0x9000, scoped, tag = 'internal scratch']
  #allocation2 [shape = 'f32[8,32]{1,0:T(8,128)}', space=vmem, size = 0x1000, scoped, tag = 'scratch operand']
  #allocation3 [shape = 's32[8]{0}', space=sflag, size = 0x20, scoped, tag = 'scratch operand']
  #allocation4 [shape = 's32[1]{0}', space=sflag, size = 0x4, scoped, tag = 'scoped memory for tpu_custom_call.1']
  #allocation5 [shape = 'u8[512]{0}', space=smem, size = 0x200, scoped, tag = 'prefetched SMEM operand 0']
  #allocation8 [shape = 's32[]', space=sflag, size = 0x4, offset = 0, fixed_abs, tag = 'sflag constant byte address 0x0 - dummy sync flag']
  #allocation9 [shape = 's32[]', space=sflag, size = 0x4, offset = 0, fixed_abs, tag = 'sflag constant byte address 0x0 - dummy sync flag']
  #allocation10 [shape = 's32[]', space=sflag, size = 0x4, offset = 0, fixed_abs, tag = 'sflag constant byte address 0x0 - dummy sync flag']
  #allocation11 [shape = 's32[]', space=sflag, size = 0x4, offset = 0, fixed_abs, tag = 'sflag constant byte address 0x0 - dummy sync flag']
  #allocation12 [shape = 's32[]', space=sflag, size = 0x4, offset = 0, fixed_abs, tag = 'sflag constant byte address 0x0 - dummy sync flag']
  #allocation13 [shape = 's32[]', space=sflag, size = 0x4, offset = 0, fixed_abs, tag = 'sflag constant byte address 0x0 - dummy sync flag']
  #allocation14 [shape = 's32[]', space=sflag, size = 0x4, offset = 0, fixed_abs, tag = 'sflag constant byte address 0x0 - dummy sync flag']
  #allocation15 [shape = 's32[]', space=sflag, size = 0x4, offset = 0, fixed_abs, tag = 'sflag constant byte address 0x0 - dummy sync flag']
  %s0 = inlined_call_operand.vmem [shape: s32[16], index: 0, kind: input, shape index: {}]
  %s1 = inlined_call_operand.vmem [shape: f32[64,32], index: 1, kind: input, shape index: {}]
  %s2 = inlined_call_operand.vmem [shape: f32[8,32], index: 2, kind: input, shape index: {}]
  %s3 = inlined_call_operand.hbm [shape: f32[2,8,32], index: 3, kind: output, shape index: {}]
  %s4 = sld [smem:[#allocation0]]
  $region277: #{tpu_custom_call.1} parent=0
    _
  %s6 = ssub.s32 1, %s4
  %s7 = scalar_select 0, %s6, %s4
  %s9 = sshll.u32 %s0, 4
  %s10 = int_to_ptr.vmem [resolvable:$true] %s9
  %12 = dma.vmem_to_smem %s10, 16, [#allocation5], [#allocation4]
  %14 = dma.done [#allocation4], 16
  %15 = sfence
  $region1: #{tpu_custom_call.1} parent=0
    #allocation6 [shape = 'u8[8192]{0}', space=vmem, size = 0x2000, scoped, tag = 'output window, operand 0']
    #allocation7 [shape = 's32[2]{0}', space=sflag, size = 0x8, scoped, tag = 'scoped memory for tpu_custom_call.1']
    %16 = vsyncpa [#allocation7], 0
    %s17 = scalar_lea.sflag [#allocation7], 1
    %18 = vsyncpa %s17, 0
    loop: start=0, step=1, limit=4
    $region2: #{tpu_custom_call.1} parent=1 // loop_pre_header
      _
    $region3: #{tpu_custom_call.1} parent=1 // loop_header
      %s20 = sphi 0, %s24
      %p21 = scmp.ge.s32.totalorder %s20, 4
      %s27 = sphi 0, %s39
      %s28 = sphi 0, %s35
      %s29 = sphi 0, %s27
      %s30 = sphi 0, %s28
      %s31 = sphi 0, %s29
      %s32 = sphi 0, %s30
      %s40 = sphi 0, %s40
      %s42 = sphi 0, %s40
      %s43 = sphi 0, %s42
      %s57 = sphi 0, %s43
      %s65 = sphi 0, %s67
      %s68 = sphi 0, %s65
      %s69 = sphi 0, %s68
      %s85 = sphi 0, %s69
    $region4: #{tpu_custom_call.1} parent=1 // loop_header_branch
      %23 = sbr.rel (%p21) target = $region8
    $region5: #{tpu_custom_call.1} parent=1 // loop_body
      %s25 = ssub.s32 %s20, 1
      %s26 = ssub.s32 %s20, 2
      %s33 = sadd.s32 1, %s28
      %p34 = scmp.ge.s32.totalorder %s33, 1
      %s35 = scalar_select %p34, 0, %s33
      %s36 = sadd.s32 1, %s27
      %s37 = scalar_select %p34, %s36, %s27
      %p38 = scmp.ge.s32.totalorder %s37, 2
      %s39 = scalar_select %p38, 0, %s37
      %s41 = sadd.s32 %s40, 1
      %p44 = scmp.eq.s32.totalorder %s20, 1
      %p45 = scmp.ne.s32.totalorder %s40, %s42
      %p46 = scmp.eq.s32.totalorder %s20, 0
      %p47 = por %p45, %p46
      %p48 = scmp.ne.s32.totalorder %s40, %s42
      %p49 = scmp.eq.s32.totalorder %s25, 1
      %p50 = por %p48, %p49
      %p51 = scmp.ne.s32.totalorder %s42, %s43
      %p52 = scmp.eq.s32.totalorder %s25, 0
      %p53 = por %p51, %p52
      %p54 = scmp.ne.s32.totalorder %s42, %s43
      %p55 = scmp.eq.s32.totalorder %s26, 1
      %p56 = por %p54, %p55
      %p58 = scmp.ne.s32.totalorder %s43, %s57
      %p59 = scmp.eq.s32.totalorder %s26, 0
      %p60 = por %p58, %p59
      %s61 = ssub.s32 %s27, %s39
      %s62 = ssub.s32 %s28, %s35
      %s63 = sor.u32 %s61, %s62
      %p64 = scmp.eq.s32.totalorder %s63, 0
      %s66 = sadd.s32 %s65, 1
      %s67 = scalar_select %p64, %s65, %s66
      %p70 = pneg %p64
      %p71 = scmp.eq.s32.totalorder %s20, 1
      %p72 = por %p70, %p71
      %p73 = scmp.ne.s32.totalorder %s65, %s68
      %p74 = scmp.eq.s32.totalorder %s20, 0
      %p75 = por %p73, %p74
      %p76 = scmp.ne.s32.totalorder %s65, %s68
      %p77 = scmp.eq.s32.totalorder %s25, 1
      %p78 = por %p76, %p77
      %p79 = scmp.ne.s32.totalorder %s68, %s69
      %p80 = scmp.eq.s32.totalorder %s25, 0
      %p81 = por %p79, %p80
      %p82 = scmp.ne.s32.totalorder %s68, %s69
      %p83 = scmp.eq.s32.totalorder %s26, 1
      %p84 = por %p82, %p83
      %p86 = scmp.ne.s32.totalorder %s69, %s85
      %p87 = scmp.eq.s32.totalorder %s26, 0
      %p88 = por %p86, %p87
      %p89 = scmp.le.s32.totalorder 1, %s20
      %p90 = scmp.lt.s32.totalorder %s20, 3
      %p91 = pnand %p89, %p90
      %p92 = pneg %p91
      // Predicated region
      $region9: #{tpu_custom_call.1} parent=5 // pred_check
        _
      $region10: #{tpu_custom_call.1} parent=5 // pred_check_branch
        %94 = sbr.rel (%p91) target = $region12
      $region11: #{tpu_custom_call.1} parent=5 // pred_region
        %s95 = ssub.s32 %s20, 1
        // Predicated region
        $region13: #{tpu_custom_call.1} parent=11 // pred_check
          %p96 = pneg %p53
        $region14: #{tpu_custom_call.1} parent=11 // pred_check_branch
          %98 = sbr.rel (%p96) target = $region16
        $region15: #{tpu_custom_call.1} parent=11 // pred_region
          _
        $region16: #{tpu_custom_call.1} parent=11 // pred_fallthru
          _
      $region12: #{tpu_custom_call.1} parent=5 // pred_fallthru
        _
      %p99 = scmp.lt.s32.totalorder %s20, 2
      // Predicated region
      $region17: #{tpu_custom_call.1} parent=5 // pred_check
        %p100 = pneg %p99
      $region18: #{tpu_custom_call.1} parent=5 // pred_check_branch
        %102 = sbr.rel (%p100) target = $region20
      $region19: #{tpu_custom_call.1} parent=5 // pred_region
        _
      $region20: #{tpu_custom_call.1} parent=5 // pred_fallthru
        _
      %p103 = scmp.le.s32.totalorder 1, %s20
      %p104 = scmp.lt.s32.totalorder %s20, 3
      %p105 = pnand %p103, %p104
      %p106 = pneg %p105
      // Predicated region
      $region21: #{tpu_custom_call.1} parent=5 // pred_check
        _
      $region22: #{tpu_custom_call.1} parent=5 // pred_check_branch
        %108 = sbr.rel (%p105) target = $region24
      $region23: #{tpu_custom_call.1} parent=5 // pred_region
        %s109 = ssub.s32 %s20, 1
        %p110 = pneg %p53
        %p111 = pneg %p50
        %p112 = pneg %p81
        %p113 = pneg %p78
        %s114 = sand.u32 %s68, 1
        %s115 = scalar_lea.sflag [#allocation7], %s114
        %s116 = sand.u32 %s68, 1
        %s117 = smul.addr %s116, 8
        %s118 = scalar_lea.vmem [#allocation6], %s117
        %s119 = smul.u32 %s29, 8
        %s120 = smul.u32 %s30, 8
        %s121 = sadd.s32 %s119, %s120
        %s122 = sld [smem:[#allocation5 + %s121]]
        %s123 = scalar_lea.vmem %s1, %s122
        // Predicated region
        $region25: #{tpu_custom_call.1} parent=23 // pred_check
          _
        $region26: #{tpu_custom_call.1} parent=23 // pred_check_branch
          %125 = sbr.rel target = $region28
        $region27: #{tpu_custom_call.1} parent=23 // pred_region
          // Predicated region
          $region40: #{tpu_custom_call.1} parent=27 // pred_check
            _
          $region41: #{tpu_custom_call.1} parent=27 // pred_check_branch
            %141 = sbr.rel (0) target = $region43
          $region42: #{tpu_custom_call.1} parent=27 // pred_region
            %s143 = ssub.s32 2, 1
            loop: start=0, step=1, limit=1
            $region44: #{tpu_custom_call.1} parent=42 // loop_pre_header
              _
            $region45: #{tpu_custom_call.1} parent=42 // loop_header
              %s145 = sphi 0, %s149
              %p146 = scmp.ge.s32.totalorder %s145, 1
              %s150 = sphi %s123, %s123
              %s151 = sphi [#allocation2], [#allocation2]
            $region46: #{tpu_custom_call.1} parent=42 // loop_header_branch
              %148 = sbr.rel (%p146) target = $region50
            $region47: #{tpu_custom_call.1} parent=42 // loop_body
              %v152 = vld [vmem:[%s150] sm:%s143]
              %153 = vst [vmem:[%s151] sm:%s143] %v152
            $region48: #{tpu_custom_call.1} parent=42 // loop_footer
              %s149 = sadd.s32 1, %s145
            $region49: #{tpu_custom_call.1} parent=42 // loop_footer_branch
              %144 = sbr.rel target = $region45
            $region50: #{tpu_custom_call.1} parent=42 // loop_exit
              _
          $region43: #{tpu_custom_call.1} parent=27 // pred_fallthru
            _
        $region28: #{tpu_custom_call.1} parent=23 // pred_fallthru
          _
        // Predicated region
        $region29: #{tpu_custom_call.1} parent=23 // pred_check
          _
        $region30: #{tpu_custom_call.1} parent=23 // pred_check_branch
          %127 = sbr.rel (0) target = $region32
        $region31: #{tpu_custom_call.1} parent=23 // pred_region
          %s129 = ssub.s32 2, 1
          loop: start=0, step=1, limit=1
          $region33: #{tpu_custom_call.1} parent=31 // loop_pre_header
            _
          $region34: #{tpu_custom_call.1} parent=31 // loop_header
            %s131 = sphi 0, %s135
            %p132 = scmp.ge.s32.totalorder %s131, 1
            %s136 = sphi %s123, %s123
            %s137 = sphi [#allocation2], [#allocation2]
          $region35: #{tpu_custom_call.1} parent=31 // loop_header_branch
            %134 = sbr.rel (%p132) target = $region39
          $region36: #{tpu_custom_call.1} parent=31 // loop_body
            %v138 = vld [vmem:[%s136] sm:%s129]
            %139 = vst [vmem:[%s137] sm:%s129] %v138
          $region37: #{tpu_custom_call.1} parent=31 // loop_footer
            %s135 = sadd.s32 1, %s131
          $region38: #{tpu_custom_call.1} parent=31 // loop_footer_branch
            %130 = sbr.rel target = $region34
          $region39: #{tpu_custom_call.1} parent=31 // loop_exit
            _
        $region32: #{tpu_custom_call.1} parent=23 // pred_fallthru
          _
        // Predicated region
        $region51: #{tpu_custom_call.1} parent=23 // pred_check
          _
        $region52: #{tpu_custom_call.1} parent=23 // pred_check_branch
          %156 = sbr.rel (0) target = $region54
        $region53: #{tpu_custom_call.1} parent=23 // pred_region
          %157 = vsyncadd [#allocation3], 16
        $region54: #{tpu_custom_call.1} parent=23 // pred_fallthru
          _
        %s158 = sadd.s32 %s121, 1
        %s159 = sld [smem:[#allocation5 + %s158]]
        %s160 = scalar_lea.vmem %s1, %s159
        %s161 = scalar_lea.vmem [#allocation2], 1
        %s162 = scalar_lea.sflag [#allocation3], 1
        // Predicated region
        $region55: #{tpu_custom_call.1} parent=23 // pred_check
          _
        $region56: #{tpu_custom_call.1} parent=23 // pred_check_branch
          %164 = sbr.rel target = $region58
        $region57: #{tpu_custom_call.1} parent=23 // pred_region
          // Predicated region
          $region70: #{tpu_custom_call.1} parent=57 // pred_check
            _
          $region71: #{tpu_custom_call.1} parent=57 // pred_check_branch
            %180 = sbr.rel (0) target = $region73
          $region72: #{tpu_custom_call.1} parent=57 // pred_region
            %s182 = ssub.s32 2, 1
            loop: start=0, step=1, limit=1
            $region74: #{tpu_custom_call.1} parent=72 // loop_pre_header
              _
            $region75: #{tpu_custom_call.1} parent=72 // loop_header
              %s184 = sphi 0, %s188
              %p185 = scmp.ge.s32.totalorder %s184, 1
              %s189 = sphi %s160, %s160
              %s190 = sphi %s161, %s161
            $region76: #{tpu_custom_call.1} parent=72 // loop_header_branch
              %187 = sbr.rel (%p185) target = $region80
            $region77: #{tpu_custom_call.1} parent=72 // loop_body
              %v191 = vld [vmem:[%s189] sm:%s182]
              %192 = vst [vmem:[%s190] sm:%s182] %v191
            $region78: #{tpu_custom_call.1} parent=72 // loop_footer
              %s188 = sadd.s32 1, %s184
            $region79: #{tpu_custom_call.1} parent=72 // loop_footer_branch
              %183 = sbr.rel target = $region75
            $region80: #{tpu_custom_call.1} parent=72 // loop_exit
              _
          $region73: #{tpu_custom_call.1} parent=57 // pred_fallthru
            _
        $region58: #{tpu_custom_call.1} parent=23 // pred_fallthru
          _
        // Predicated region
        $region59: #{tpu_custom_call.1} parent=23 // pred_check
          _
        $region60: #{tpu_custom_call.1} parent=23 // pred_check_branch
          %166 = sbr.rel (0) target = $region62
        $region61: #{tpu_custom_call.1} parent=23 // pred_region
          %s168 = ssub.s32 2, 1
          loop: start=0, step=1, limit=1
          $region63: #{tpu_custom_call.1} parent=61 // loop_pre_header
            _
          $region64: #{tpu_custom_call.1} parent=61 // loop_header
            %s170 = sphi 0, %s174
            %p171 = scmp.ge.s32.totalorder %s170, 1
            %s175 = sphi %s160, %s160
            %s176 = sphi %s161, %s161
          $region65: #{tpu_custom_call.1} parent=61 // loop_header_branch
            %173 = sbr.rel (%p171) target = $region69
          $region66: #{tpu_custom_call.1} parent=61 // loop_body
            %v177 = vld [vmem:[%s175] sm:%s168]
            %178 = vst [vmem:[%s176] sm:%s168] %v177
          $region67: #{tpu_custom_call.1} parent=61 // loop_footer
            %s174 = sadd.s32 1, %s170
          $region68: #{tpu_custom_call.1} parent=61 // loop_footer_branch
            %169 = sbr.rel target = $region64
          $region69: #{tpu_custom_call.1} parent=61 // loop_exit
            _
        $region62: #{tpu_custom_call.1} parent=23 // pred_fallthru
          _
        // Predicated region
        $region81: #{tpu_custom_call.1} parent=23 // pred_check
          _
        $region82: #{tpu_custom_call.1} parent=23 // pred_check_branch
          %195 = sbr.rel (0) target = $region84
        $region83: #{tpu_custom_call.1} parent=23 // pred_region
          %196 = vsyncadd %s162, 16
        $region84: #{tpu_custom_call.1} parent=23 // pred_fallthru
          _
        %s197 = sadd.s32 %s121, 2
        %s198 = sld [smem:[#allocation5 + %s197]]
        %s199 = scalar_lea.vmem %s1, %s198
        %s200 = scalar_lea.vmem [#allocation2], 2
        %s201 = scalar_lea.sflag [#allocation3], 2
        // Predicated region
        $region85: #{tpu_custom_call.1} parent=23 // pred_check
          _
        $region86: #{tpu_custom_call.1} parent=23 // pred_check_branch
          %203 = sbr.rel target = $region88
        $region87: #{tpu_custom_call.1} parent=23 // pred_region
          // Predicated region
          $region100: #{tpu_custom_call.1} parent=87 // pred_check
            _
          $region101: #{tpu_custom_call.1} parent=87 // pred_check_branch
            %219 = sbr.rel (0) target = $region103
          $region102: #{tpu_custom_call.1} parent=87 // pred_region
            %s221 = ssub.s32 2, 1
            loop: start=0, step=1, limit=1
            $region104: #{tpu_custom_call.1} parent=102 // loop_pre_header
              _
            $region105: #{tpu_custom_call.1} parent=102 // loop_header
              %s223 = sphi 0, %s227
              %p224 = scmp.ge.s32.totalorder %s223, 1
              %s228 = sphi %s199, %s199
              %s229 = sphi %s200, %s200
            $region106: #{tpu_custom_call.1} parent=102 // loop_header_branch
              %226 = sbr.rel (%p224) target = $region110
            $region107: #{tpu_custom_call.1} parent=102 // loop_body
              %v230 = vld [vmem:[%s228] sm:%s221]
              %231 = vst [vmem:[%s229] sm:%s221] %v230
            $region108: #{tpu_custom_call.1} parent=102 // loop_footer
              %s227 = sadd.s32 1, %s223
            $region109: #{tpu_custom_call.1} parent=102 // loop_footer_branch
              %222 = sbr.rel target = $region105
            $region110: #{tpu_custom_call.1} parent=102 // loop_exit
              _
          $region103: #{tpu_custom_call.1} parent=87 // pred_fallthru
            _
        $region88: #{tpu_custom_call.1} parent=23 // pred_fallthru
          _
        // Predicated region
        $region89: #{tpu_custom_call.1} parent=23 // pred_check
          _
        $region90: #{tpu_custom_call.1} parent=23 // pred_check_branch
          %205 = sbr.rel (0) target = $region92
        $region91: #{tpu_custom_call.1} parent=23 // pred_region
          %s207 = ssub.s32 2, 1
          loop: start=0, step=1, limit=1
          $region93: #{tpu_custom_call.1} parent=91 // loop_pre_header
            _
          $region94: #{tpu_custom_call.1} parent=91 // loop_header
            %s209 = sphi 0, %s213
            %p210 = scmp.ge.s32.totalorder %s209, 1
            %s214 = sphi %s199, %s199
            %s215 = sphi %s200, %s200
          $region95: #{tpu_custom_call.1} parent=91 // loop_header_branch
            %212 = sbr.rel (%p210) target = $region99
          $region96: #{tpu_custom_call.1} parent=91 // loop_body
            %v216 = vld [vmem:[%s214] sm:%s207]
            %217 = vst [vmem:[%s215] sm:%s207] %v216
          $region97: #{tpu_custom_call.1} parent=91 // loop_footer
            %s213 = sadd.s32 1, %s209
          $region98: #{tpu_custom_call.1} parent=91 // loop_footer_branch
            %208 = sbr.rel target = $region94
          $region99: #{tpu_custom_call.1} parent=91 // loop_exit
            _
        $region92: #{tpu_custom_call.1} parent=23 // pred_fallthru
          _
        // Predicated region
        $region111: #{tpu_custom_call.1} parent=23 // pred_check
          _
        $region112: #{tpu_custom_call.1} parent=23 // pred_check_branch
          %234 = sbr.rel (0) target = $region114
        $region113: #{tpu_custom_call.1} parent=23 // pred_region
          %235 = vsyncadd %s201, 16
        $region114: #{tpu_custom_call.1} parent=23 // pred_fallthru
          _
        %s236 = sadd.s32 %s121, 3
        %s237 = sld [smem:[#allocation5 + %s236]]
        %s238 = scalar_lea.vmem %s1, %s237
        %s239 = scalar_lea.vmem [#allocation2], 3
        %s240 = scalar_lea.sflag [#allocation3], 3
        // Predicated region
        $region115: #{tpu_custom_call.1} parent=23 // pred_check
          _
        $region116: #{tpu_custom_call.1} parent=23 // pred_check_branch
          %242 = sbr.rel target = $region118
        $region117: #{tpu_custom_call.1} parent=23 // pred_region
          // Predicated region
          $region130: #{tpu_custom_call.1} parent=117 // pred_check
            _
          $region131: #{tpu_custom_call.1} parent=117 // pred_check_branch
            %258 = sbr.rel (0) target = $region133
          $region132: #{tpu_custom_call.1} parent=117 // pred_region
            %s260 = ssub.s32 2, 1
            loop: start=0, step=1, limit=1
            $region134: #{tpu_custom_call.1} parent=132 // loop_pre_header
              _
            $region135: #{tpu_custom_call.1} parent=132 // loop_header
              %s262 = sphi 0, %s266
              %p263 = scmp.ge.s32.totalorder %s262, 1
              %s267 = sphi %s238, %s238
              %s268 = sphi %s239, %s239
            $region136: #{tpu_custom_call.1} parent=132 // loop_header_branch
              %265 = sbr.rel (%p263) target = $region140
            $region137: #{tpu_custom_call.1} parent=132 // loop_body
              %v269 = vld [vmem:[%s267] sm:%s260]
              %270 = vst [vmem:[%s268] sm:%s260] %v269
            $region138: #{tpu_custom_call.1} parent=132 // loop_footer
              %s266 = sadd.s32 1, %s262
            $region139: #{tpu_custom_call.1} parent=132 // loop_footer_branch
              %261 = sbr.rel target = $region135
            $region140: #{tpu_custom_call.1} parent=132 // loop_exit
              _
          $region133: #{tpu_custom_call.1} parent=117 // pred_fallthru
            _
        $region118: #{tpu_custom_call.1} parent=23 // pred_fallthru
          _
        // Predicated region
        $region119: #{tpu_custom_call.1} parent=23 // pred_check
          _
        $region120: #{tpu_custom_call.1} parent=23 // pred_check_branch
          %244 = sbr.rel (0) target = $region122
        $region121: #{tpu_custom_call.1} parent=23 // pred_region
          %s246 = ssub.s32 2, 1
          loop: start=0, step=1, limit=1
          $region123: #{tpu_custom_call.1} parent=121 // loop_pre_header
            _
          $region124: #{tpu_custom_call.1} parent=121 // loop_header
            %s248 = sphi 0, %s252
            %p249 = scmp.ge.s32.totalorder %s248, 1
            %s253 = sphi %s238, %s238
            %s254 = sphi %s239, %s239
          $region125: #{tpu_custom_call.1} parent=121 // loop_header_branch
            %251 = sbr.rel (%p249) target = $region129
          $region126: #{tpu_custom_call.1} parent=121 // loop_body
            %v255 = vld [vmem:[%s253] sm:%s246]
            %256 = vst [vmem:[%s254] sm:%s246] %v255
          $region127: #{tpu_custom_call.1} parent=121 // loop_footer
            %s252 = sadd.s32 1, %s248
          $region128: #{tpu_custom_call.1} parent=121 // loop_footer_branch
            %247 = sbr.rel target = $region124
          $region129: #{tpu_custom_call.1} parent=121 // loop_exit
            _
        $region122: #{tpu_custom_call.1} parent=23 // pred_fallthru
          _
        // Predicated region
        $region141: #{tpu_custom_call.1} parent=23 // pred_check
          _
        $region142: #{tpu_custom_call.1} parent=23 // pred_check_branch
          %273 = sbr.rel (0) target = $region144
        $region143: #{tpu_custom_call.1} parent=23 // pred_region
          %274 = vsyncadd %s240, 16
        $region144: #{tpu_custom_call.1} parent=23 // pred_fallthru
          _
        %s275 = sadd.s32 %s121, 4
        %s276 = sld [smem:[#allocation5 + %s275]]
        %s277 = scalar_lea.vmem %s1, %s276
        %s278 = scalar_lea.vmem [#allocation2], 4
        %s279 = scalar_lea.sflag [#allocation3], 4
        // Predicated region
        $region145: #{tpu_custom_call.1} parent=23 // pred_check
          _
        $region146: #{tpu_custom_call.1} parent=23 // pred_check_branch
          %281 = sbr.rel target = $region148
        $region147: #{tpu_custom_call.1} parent=23 // pred_region
          // Predicated region
          $region160: #{tpu_custom_call.1} parent=147 // pred_check
            _
          $region161: #{tpu_custom_call.1} parent=147 // pred_check_branch
            %297 = sbr.rel (0) target = $region163
          $region162: #{tpu_custom_call.1} parent=147 // pred_region
            %s299 = ssub.s32 2, 1
            loop: start=0, step=1, limit=1
            $region164: #{tpu_custom_call.1} parent=162 // loop_pre_header
              _
            $region165: #{tpu_custom_call.1} parent=162 // loop_header
              %s301 = sphi 0, %s305
              %p302 = scmp.ge.s32.totalorder %s301, 1
              %s306 = sphi %s277, %s277
              %s307 = sphi %s278, %s278
            $region166: #{tpu_custom_call.1} parent=162 // loop_header_branch
              %304 = sbr.rel (%p302) target = $region170
            $region167: #{tpu_custom_call.1} parent=162 // loop_body
              %v308 = vld [vmem:[%s306] sm:%s299]
              %309 = vst [vmem:[%s307] sm:%s299] %v308
            $region168: #{tpu_custom_call.1} parent=162 // loop_footer
              %s305 = sadd.s32 1, %s301
            $region169: #{tpu_custom_call.1} parent=162 // loop_footer_branch
              %300 = sbr.rel target = $region165
            $region170: #{tpu_custom_call.1} parent=162 // loop_exit
              _
          $region163: #{tpu_custom_call.1} parent=147 // pred_fallthru
            _
        $region148: #{tpu_custom_call.1} parent=23 // pred_fallthru
          _
        // Predicated region
        $region149: #{tpu_custom_call.1} parent=23 // pred_check
          _
        $region150: #{tpu_custom_call.1} parent=23 // pred_check_branch
          %283 = sbr.rel (0) target = $region152
        $region151: #{tpu_custom_call.1} parent=23 // pred_region
          %s285 = ssub.s32 2, 1
          loop: start=0, step=1, limit=1
          $region153: #{tpu_custom_call.1} parent=151 // loop_pre_header
            _
          $region154: #{tpu_custom_call.1} parent=151 // loop_header
            %s287 = sphi 0, %s291
            %p288 = scmp.ge.s32.totalorder %s287, 1
            %s292 = sphi %s277, %s277
            %s293 = sphi %s278, %s278
          $region155: #{tpu_custom_call.1} parent=151 // loop_header_branch
            %290 = sbr.rel (%p288) target = $region159
          $region156: #{tpu_custom_call.1} parent=151 // loop_body
            %v294 = vld [vmem:[%s292] sm:%s285]
            %295 = vst [vmem:[%s293] sm:%s285] %v294
          $region157: #{tpu_custom_call.1} parent=151 // loop_footer
            %s291 = sadd.s32 1, %s287
          $region158: #{tpu_custom_call.1} parent=151 // loop_footer_branch
            %286 = sbr.rel target = $region154
          $region159: #{tpu_custom_call.1} parent=151 // loop_exit
            _
        $region152: #{tpu_custom_call.1} parent=23 // pred_fallthru
          _
        // Predicated region
        $region171: #{tpu_custom_call.1} parent=23 // pred_check
          _
        $region172: #{tpu_custom_call.1} parent=23 // pred_check_branch
          %312 = sbr.rel (0) target = $region174
        $region173: #{tpu_custom_call.1} parent=23 // pred_region
          %313 = vsyncadd %s279, 16
        $region174: #{tpu_custom_call.1} parent=23 // pred_fallthru
          _
        %s314 = sadd.s32 %s121, 5
        %s315 = sld [smem:[#allocation5 + %s314]]
        %s316 = scalar_lea.vmem %s1, %s315
        %s317 = scalar_lea.vmem [#allocation2], 5
        %s318 = scalar_lea.sflag [#allocation3], 5
        // Predicated region
        $region175: #{tpu_custom_call.1} parent=23 // pred_check
          _
        $region176: #{tpu_custom_call.1} parent=23 // pred_check_branch
          %320 = sbr.rel target = $region178
        $region177: #{tpu_custom_call.1} parent=23 // pred_region
          // Predicated region
          $region190: #{tpu_custom_call.1} parent=177 // pred_check
            _
          $region191: #{tpu_custom_call.1} parent=177 // pred_check_branch
            %336 = sbr.rel (0) target = $region193
          $region192: #{tpu_custom_call.1} parent=177 // pred_region
            %s338 = ssub.s32 2, 1
            loop: start=0, step=1, limit=1
            $region194: #{tpu_custom_call.1} parent=192 // loop_pre_header
              _
            $region195: #{tpu_custom_call.1} parent=192 // loop_header
              %s340 = sphi 0, %s344
              %p341 = scmp.ge.s32.totalorder %s340, 1
              %s345 = sphi %s316, %s316
              %s346 = sphi %s317, %s317
            $region196: #{tpu_custom_call.1} parent=192 // loop_header_branch
              %343 = sbr.rel (%p341) target = $region200
            $region197: #{tpu_custom_call.1} parent=192 // loop_body
              %v347 = vld [vmem:[%s345] sm:%s338]
              %348 = vst [vmem:[%s346] sm:%s338] %v347
            $region198: #{tpu_custom_call.1} parent=192 // loop_footer
              %s344 = sadd.s32 1, %s340
            $region199: #{tpu_custom_call.1} parent=192 // loop_footer_branch
              %339 = sbr.rel target = $region195
            $region200: #{tpu_custom_call.1} parent=192 // loop_exit
              _
          $region193: #{tpu_custom_call.1} parent=177 // pred_fallthru
            _
        $region178: #{tpu_custom_call.1} parent=23 // pred_fallthru
          _
        // Predicated region
        $region179: #{tpu_custom_call.1} parent=23 // pred_check
          _
        $region180: #{tpu_custom_call.1} parent=23 // pred_check_branch
          %322 = sbr.rel (0) target = $region182
        $region181: #{tpu_custom_call.1} parent=23 // pred_region
          %s324 = ssub.s32 2, 1
          loop: start=0, step=1, limit=1
          $region183: #{tpu_custom_call.1} parent=181 // loop_pre_header
            _
          $region184: #{tpu_custom_call.1} parent=181 // loop_header
            %s326 = sphi 0, %s330
            %p327 = scmp.ge.s32.totalorder %s326, 1
            %s331 = sphi %s316, %s316
            %s332 = sphi %s317, %s317
          $region185: #{tpu_custom_call.1} parent=181 // loop_header_branch
            %329 = sbr.rel (%p327) target = $region189
          $region186: #{tpu_custom_call.1} parent=181 // loop_body
            %v333 = vld [vmem:[%s331] sm:%s324]
            %334 = vst [vmem:[%s332] sm:%s324] %v333
          $region187: #{tpu_custom_call.1} parent=181 // loop_footer
            %s330 = sadd.s32 1, %s326
          $region188: #{tpu_custom_call.1} parent=181 // loop_footer_branch
            %325 = sbr.rel target = $region184
          $region189: #{tpu_custom_call.1} parent=181 // loop_exit
            _
        $region182: #{tpu_custom_call.1} parent=23 // pred_fallthru
          _
        // Predicated region
        $region201: #{tpu_custom_call.1} parent=23 // pred_check
          _
        $region202: #{tpu_custom_call.1} parent=23 // pred_check_branch
          %351 = sbr.rel (0) target = $region204
        $region203: #{tpu_custom_call.1} parent=23 // pred_region
          %352 = vsyncadd %s318, 16
        $region204: #{tpu_custom_call.1} parent=23 // pred_fallthru
          _
        %s353 = sadd.s32 %s121, 6
        %s354 = sld [smem:[#allocation5 + %s353]]
        %s355 = scalar_lea.vmem %s1, %s354
        %s356 = scalar_lea.vmem [#allocation2], 6
        %s357 = scalar_lea.sflag [#allocation3], 6
        // Predicated region
        $region205: #{tpu_custom_call.1} parent=23 // pred_check
          _
        $region206: #{tpu_custom_call.1} parent=23 // pred_check_branch
          %359 = sbr.rel target = $region208
        $region207: #{tpu_custom_call.1} parent=23 // pred_region
          // Predicated region
          $region220: #{tpu_custom_call.1} parent=207 // pred_check
            _
          $region221: #{tpu_custom_call.1} parent=207 // pred_check_branch
            %375 = sbr.rel (0) target = $region223
          $region222: #{tpu_custom_call.1} parent=207 // pred_region
            %s377 = ssub.s32 2, 1
            loop: start=0, step=1, limit=1
            $region224: #{tpu_custom_call.1} parent=222 // loop_pre_header
              _
            $region225: #{tpu_custom_call.1} parent=222 // loop_header
              %s379 = sphi 0, %s383
              %p380 = scmp.ge.s32.totalorder %s379, 1
              %s384 = sphi %s355, %s355
              %s385 = sphi %s356, %s356
            $region226: #{tpu_custom_call.1} parent=222 // loop_header_branch
              %382 = sbr.rel (%p380) target = $region230
            $region227: #{tpu_custom_call.1} parent=222 // loop_body
              %v386 = vld [vmem:[%s384] sm:%s377]
              %387 = vst [vmem:[%s385] sm:%s377] %v386
            $region228: #{tpu_custom_call.1} parent=222 // loop_footer
              %s383 = sadd.s32 1, %s379
            $region229: #{tpu_custom_call.1} parent=222 // loop_footer_branch
              %378 = sbr.rel target = $region225
            $region230: #{tpu_custom_call.1} parent=222 // loop_exit
              _
          $region223: #{tpu_custom_call.1} parent=207 // pred_fallthru
            _
        $region208: #{tpu_custom_call.1} parent=23 // pred_fallthru
          _
        // Predicated region
        $region209: #{tpu_custom_call.1} parent=23 // pred_check
          _
        $region210: #{tpu_custom_call.1} parent=23 // pred_check_branch
          %361 = sbr.rel (0) target = $region212
        $region211: #{tpu_custom_call.1} parent=23 // pred_region
          %s363 = ssub.s32 2, 1
          loop: start=0, step=1, limit=1
          $region213: #{tpu_custom_call.1} parent=211 // loop_pre_header
            _
          $region214: #{tpu_custom_call.1} parent=211 // loop_header
            %s365 = sphi 0, %s369
            %p366 = scmp.ge.s32.totalorder %s365, 1
            %s370 = sphi %s355, %s355
            %s371 = sphi %s356, %s356
          $region215: #{tpu_custom_call.1} parent=211 // loop_header_branch
            %368 = sbr.rel (%p366) target = $region219
          $region216: #{tpu_custom_call.1} parent=211 // loop_body
            %v372 = vld [vmem:[%s370] sm:%s363]
            %373 = vst [vmem:[%s371] sm:%s363] %v372
          $region217: #{tpu_custom_call.1} parent=211 // loop_footer
            %s369 = sadd.s32 1, %s365
          $region218: #{tpu_custom_call.1} parent=211 // loop_footer_branch
            %364 = sbr.rel target = $region214
          $region219: #{tpu_custom_call.1} parent=211 // loop_exit
            _
        $region212: #{tpu_custom_call.1} parent=23 // pred_fallthru
          _
        // Predicated region
        $region231: #{tpu_custom_call.1} parent=23 // pred_check
          _
        $region232: #{tpu_custom_call.1} parent=23 // pred_check_branch
          %390 = sbr.rel (0) target = $region234
        $region233: #{tpu_custom_call.1} parent=23 // pred_region
          %391 = vsyncadd %s357, 16
        $region234: #{tpu_custom_call.1} parent=23 // pred_fallthru
          _
        %s392 = sadd.s32 %s121, 7
        %s393 = sld [smem:[#allocation5 + %s392]]
        %s394 = scalar_lea.vmem %s1, %s393
        %s395 = scalar_lea.vmem [#allocation2], 7
        %s396 = scalar_lea.sflag [#allocation3], 7
        // Predicated region
        $region235: #{tpu_custom_call.1} parent=23 // pred_check
          _
        $region236: #{tpu_custom_call.1} parent=23 // pred_check_branch
          %398 = sbr.rel target = $region238
        $region237: #{tpu_custom_call.1} parent=23 // pred_region
          // Predicated region
          $region250: #{tpu_custom_call.1} parent=237 // pred_check
            _
          $region251: #{tpu_custom_call.1} parent=237 // pred_check_branch
            %414 = sbr.rel (0) target = $region253
          $region252: #{tpu_custom_call.1} parent=237 // pred_region
            %s416 = ssub.s32 2, 1
            loop: start=0, step=1, limit=1
            $region254: #{tpu_custom_call.1} parent=252 // loop_pre_header
              _
            $region255: #{tpu_custom_call.1} parent=252 // loop_header
              %s418 = sphi 0, %s422
              %p419 = scmp.ge.s32.totalorder %s418, 1
              %s423 = sphi %s394, %s394
              %s424 = sphi %s395, %s395
            $region256: #{tpu_custom_call.1} parent=252 // loop_header_branch
              %421 = sbr.rel (%p419) target = $region260
            $region257: #{tpu_custom_call.1} parent=252 // loop_body
              %v425 = vld [vmem:[%s423] sm:%s416]
              %426 = vst [vmem:[%s424] sm:%s416] %v425
            $region258: #{tpu_custom_call.1} parent=252 // loop_footer
              %s422 = sadd.s32 1, %s418
            $region259: #{tpu_custom_call.1} parent=252 // loop_footer_branch
              %417 = sbr.rel target = $region255
            $region260: #{tpu_custom_call.1} parent=252 // loop_exit
              _
          $region253: #{tpu_custom_call.1} parent=237 // pred_fallthru
            _
        $region238: #{tpu_custom_call.1} parent=23 // pred_fallthru
          _
        // Predicated region
        $region239: #{tpu_custom_call.1} parent=23 // pred_check
          _
        $region240: #{tpu_custom_call.1} parent=23 // pred_check_branch
          %400 = sbr.rel (0) target = $region242
        $region241: #{tpu_custom_call.1} parent=23 // pred_region
          %s402 = ssub.s32 2, 1
          loop: start=0, step=1, limit=1
          $region243: #{tpu_custom_call.1} parent=241 // loop_pre_header
            _
          $region244: #{tpu_custom_call.1} parent=241 // loop_header
            %s404 = sphi 0, %s408
            %p405 = scmp.ge.s32.totalorder %s404, 1
            %s409 = sphi %s394, %s394
            %s410 = sphi %s395, %s395
          $region245: #{tpu_custom_call.1} parent=241 // loop_header_branch
            %407 = sbr.rel (%p405) target = $region249
          $region246: #{tpu_custom_call.1} parent=241 // loop_body
            %v411 = vld [vmem:[%s409] sm:%s402]
            %412 = vst [vmem:[%s410] sm:%s402] %v411
          $region247: #{tpu_custom_call.1} parent=241 // loop_footer
            %s408 = sadd.s32 1, %s404
          $region248: #{tpu_custom_call.1} parent=241 // loop_footer_branch
            %403 = sbr.rel target = $region244
          $region249: #{tpu_custom_call.1} parent=241 // loop_exit
            _
        $region242: #{tpu_custom_call.1} parent=23 // pred_fallthru
          _
        // Predicated region
        $region261: #{tpu_custom_call.1} parent=23 // pred_check
          _
        $region262: #{tpu_custom_call.1} parent=23 // pred_check_branch
          %429 = sbr.rel (0) target = $region264
        $region263: #{tpu_custom_call.1} parent=23 // pred_region
          %430 = vsyncadd %s396, 16
        $region264: #{tpu_custom_call.1} parent=23 // pred_fallthru
          _
        %s431 = sld [smem:[#allocation5 + %s121]]
        %s432 = smul.u32 1, 1
        %s433 = sshll.u32 %s432, 4
        %434 = dma.done [#allocation3], %s433
        %s435 = sld [smem:[#allocation5 + %s158]]
        %s436 = sshll.u32 %s432, 4
        %437 = dma.done %s162, %s436
        %s438 = sld [smem:[#allocation5 + %s197]]
        %s439 = sshll.u32 %s432, 4
        %440 = dma.done %s201, %s439
        %s441 = sld [smem:[#allocation5 + %s236]]
        %s442 = sshll.u32 %s432, 4
        %443 = dma.done %s240, %s442
        %s444 = sld [smem:[#allocation5 + %s275]]
        %s445 = sshll.u32 %s432, 4
        %446 = dma.done %s279, %s445
        %s447 = sld [smem:[#allocation5 + %s314]]
        %s448 = sshll.u32 %s432, 4
        %449 = dma.done %s318, %s448
        %s450 = sld [smem:[#allocation5 + %s353]]
        %s451 = sshll.u32 %s432, 4
        %452 = dma.done %s357, %s451
        %s453 = sld [smem:[#allocation5 + %s392]]
        %s454 = sshll.u32 %s432, 4
        %455 = dma.done %s396, %s454
        %v456 = vld [vmem:[%s2] sm:$0xff]
        %v457 = vld [vmem:[#allocation2] sm:$0xff]
        %v458 = vadd.f32 %v457, %v456
        %vm459 = vcmask 261120
        %460 = vst.msk [vmem:[%s118] sm:$0xff] %vm459, %v458
        %s461 = sand.u32 %s68, 1
        %s462 = scalar_lea.sflag [#allocation7], %s461
        %s463 = sand.u32 %s68, 1
        %s464 = smul.addr %s463, 8
        %s465 = scalar_lea.vmem [#allocation6], %s464
        // Predicated region
        $region265: #{tpu_custom_call.1} parent=23 // pred_check
          %p466 = pneg %p78
        $region266: #{tpu_custom_call.1} parent=23 // pred_check_branch
          %468 = sbr.rel (%p466) target = $region268
        $region267: #{tpu_custom_call.1} parent=23 // pred_region
          %470 = vsyncadd %s462, 0
          %s471 = sadd.s32 %s30, %s29
          %s472 = smul.addr %s471, 8
          %s473 = scalar_lea.hbm %s3, %s472
          %s475 = sshll.u32 %s465, 4
          %s476 = int_to_ptr.vmem [resolvable:$true] %s475
          %s477 = sshll.u32 %s473, 4
          %s478 = int_to_ptr.hbm [resolvable:$true] %s477
          %480 = dma.vmem_to_hbm [thread:$0]  %s476, 128, %s478, %s462
        $region268: #{tpu_custom_call.1} parent=23 // pred_fallthru
          _
      $region24: #{tpu_custom_call.1} parent=5 // pred_fallthru
        _
      %p481 = scmp.le.s32.totalorder 2, %s20
      // Predicated region
      $region269: #{tpu_custom_call.1} parent=5 // pred_check
        %p482 = pneg %p481
      $region270: #{tpu_custom_call.1} parent=5 // pred_check_branch
        %484 = sbr.rel (%p482) target = $region272
      $region271: #{tpu_custom_call.1} parent=5 // pred_region
        %s485 = ssub.s32 %s20, 2
        // Predicated region
        $region273: #{tpu_custom_call.1} parent=271 // pred_check
          %p486 = pneg %p84
        $region274: #{tpu_custom_call.1} parent=271 // pred_check_branch
          %488 = sbr.rel (%p486) target = $region276
        $region275: #{tpu_custom_call.1} parent=271 // pred_region
          %s489 = sand.u32 %s69, 1
          %s490 = scalar_lea.sflag [#allocation7], %s489
          %s491 = sand.u32 %s69, 1
          %s492 = smul.addr %s491, 8
          %s493 = scalar_lea.vmem [#allocation6], %s492
          %495 = dma.done %s490, 128
        $region276: #{tpu_custom_call.1} parent=271 // pred_fallthru
          _
      $region272: #{tpu_custom_call.1} parent=5 // pred_fallthru
        _
    $region6: #{tpu_custom_call.1} parent=1 // loop_footer
      %s24 = sadd.s32 1, %s20
    $region7: #{tpu_custom_call.1} parent=1 // loop_footer_branch
      %19 = sbr.rel target = $region3
    $region8: #{tpu_custom_call.1} parent=1 // loop_exit
      _
    %496 = vsyncpa [#allocation7], 1
    %s497 = scalar_lea.sflag [#allocation7], 1
    %498 = vsyncpa %s497, 1
  %499 = vsyncmov [#allocation3]
  %s500 = vpop.sfrf %499
  %p501 = scmp.eq.s32.totalorder %s500, 0
  %p502 = pneg %p501
  %504 = shalt.err (%p502)
  %s505 = scalar_lea.sflag [#allocation3], 1
  %506 = vsyncmov %s505
  %s507 = vpop.sfrf %506
  %p508 = scmp.eq.s32.totalorder %s507, 0
  %p509 = pneg %p508
  %511 = shalt.err (%p509)
  %s512 = scalar_lea.sflag [#allocation3], 2
  %513 = vsyncmov %s512
  %s514 = vpop.sfrf %513
  %p515 = scmp.eq.s32.totalorder %s514, 0
  %p516 = pneg %p515
  %518 = shalt.err (%p516)
  %s519 = scalar_lea.sflag [#allocation3], 3
  %520 = vsyncmov %s519
  %s521 = vpop.sfrf %520
  %p522 = scmp.eq.s32.totalorder %s521, 0
  %p523 = pneg %p522
  %525 = shalt.err (%p523)
  %s526 = scalar_lea.sflag [#allocation3], 4
  %527 = vsyncmov %s526
  %s528 = vpop.sfrf %527
  %p529 = scmp.eq.s32.totalorder %s528, 0
  %p530 = pneg %p529
  %532 = shalt.err (%p530)
  %s533 = scalar_lea.sflag [#allocation3], 5
  %534 = vsyncmov %s533
  %s535 = vpop.sfrf %534
  %p536 = scmp.eq.s32.totalorder %s535, 0
  %p537 = pneg %p536
  %539 = shalt.err (%p537)
  %s540 = scalar_lea.sflag [#allocation3], 6
  %541 = vsyncmov %s540
  %s542 = vpop.sfrf %541
  %p543 = scmp.eq.s32.totalorder %s542, 0
  %p544 = pneg %p543
  %546 = shalt.err (%p544)
  %s547 = scalar_lea.sflag [#allocation3], 7
  %548 = vsyncmov %s547
  %s549 = vpop.sfrf %548
  %p550 = scmp.eq.s32.totalorder %s549, 0
  %p551 = pneg %p550
  %553 = shalt.err (%p551)

</llo_original>
